<compile_context>
chip_gen: v5e
topology: v5e:2x2
jax: 0.10.0
libtpu: 0.0.40
codegen_flags: <defaults>
</compile_context>

<pallas_src>
import math

import jax
import jax.numpy as jnp
from jax import lax
from jax.experimental import pallas as pl
from jax.experimental.pallas import tpu as pltpu

LN_EPS = 1e-5  # torch.nn.LayerNorm default


# ----------------------------- Pallas kernel --------------------------------
def _add_ln_kernel(pos_ref, x_ref, g_ref, b_ref, o_ref):
    # pos_ref:        (C, tile_p)      hoisted conv(pos) tile, shared over batch
    # x_ref / o_ref:  (1, C, tile_p)   NCHW feats viewed as (B, C, H*W)
    # g_ref / b_ref:  (C, 1)           LayerNorm affine params
    x = x_ref[...].astype(jnp.float32) + pos_ref[...]        # (1, C, tile_p)
    mean = jnp.mean(x, axis=1, keepdims=True)                 # reduce over C (sublanes)
    xc = x - mean
    var = jnp.mean(xc * xc, axis=1, keepdims=True)            # biased variance (torch)
    inv = lax.rsqrt(var + LN_EPS)
    o_ref[...] = (xc * inv * g_ref[...] + b_ref[...]).astype(o_ref.dtype)


def _pick_tile_p(hw, c, *, vmem_budget_bytes=24 << 20, max_tile=4096):
    """Largest multiple-of-128 pixel tile that divides H*W and fits VMEM.

    Budget: 3 double-buffered f32 streams of (C, tile_p): feats in, conv_pos in,
    output.  Conservative enough for v7x's smaller VMEM as well.
    """
    cap = max(128, (vmem_budget_bytes // (6 * c * 4)) // 128 * 128)
    cap = min(cap, max_tile, hw)
    if hw % 128 != 0 or cap < 128:
        # Full-extent block on the pixel axis is always legal (equals array dim).
        # TODO(synk): for very large, non-128-divisible H*W, pad the pixel axis
        # instead of taking a single full-extent block.
        return hw
    best = 128
    for t in range(128, cap + 1, 128):
        if hw % t == 0:
            best = t
    return best


def fused_add_layernorm(feats_bcp, conv_pos_t, gamma, beta, *, tile_p):
    """feats_bcp: (B, C, HW) f32; conv_pos_t: (C, HW); gamma/beta: (C, 1)."""
    b, c, hw = feats_bcp.shape
    assert hw % tile_p == 0
    grid = (hw // tile_p, b)  # batch innermost -> conv_pos tile stays VMEM-resident

    feat_spec = pl.BlockSpec((1, c, tile_p), lambda pi, bi: (bi, 0, pi))
    pos_spec = pl.BlockSpec((c, tile_p), lambda pi, bi: (0, pi))
    param_spec = pl.BlockSpec((c, 1), lambda pi, bi: (0, 0))

    bytes_accessed = (2 * b * hw * c + hw * c + 2 * c) * 4
    cost = pl.CostEstimate(
        flops=10 * b * hw * c,
        transcendentals=b * hw,
        bytes_accessed=bytes_accessed,
    )

    return pl.pallas_call(
        _add_ln_kernel,
        out_shape=jax.ShapeDtypeStruct((b, c, hw), feats_bcp.dtype),
        grid_spec=pltpu.PrefetchScalarGridSpec(
            num_scalar_prefetch=0,
            grid=grid,
            in_specs=[pos_spec, feat_spec, param_spec, param_spec],
            out_specs=feat_spec,
        ),
        compiler_params=pltpu.CompilerParams(
            dimension_semantics=("parallel", "parallel")),
        cost_estimate=cost,
    )(conv_pos_t, feats_bcp, gamma, beta)


# ------------------------------- JAX glue ------------------------------------
def sinusoidal_embedding(positions, embedding_dim):
    """Matches SinusoidalPositionalEmbedding.get_embedding (tensor2tensor style)."""
    half_dim = embedding_dim // 2
    assert half_dim >= 2, "embedding_dim too small (divide-by-zero in freq scale)"
    scale = math.log(10000.0) / (half_dim - 1)
    freqs = jnp.exp(jnp.arange(half_dim, dtype=jnp.float32) * -scale)
    args = positions.astype(jnp.float32)[..., None] * freqs          # (..., half_dim)
    emb = jnp.concatenate([jnp.sin(args), jnp.cos(args)], axis=-1)   # (..., 2*half_dim)
    if embedding_dim % 2 == 1:
        emb = jnp.concatenate(
            [emb, jnp.zeros(emb.shape[:-1] + (1,), jnp.float32)], axis=-1)
    return emb


def sinusoidal_positional_conv(feats_nchw, params):
    """feats_nchw: (B, C, H, W) float32. Returns (B, C, H, W) like the torch module."""
    b, c, h, w = feats_nchw.shape
    assert c % 2 == 0 and c >= 8, "need even in_channels >= 8 (half_dim >= 2)"
    e = c // 2

    # Batch-invariant positional table (H, W, C): channels = [emb(x) | emb(y)].
    xx_emb = sinusoidal_embedding(jnp.arange(w, dtype=jnp.int32), e)      # (W, C//2)
    yy_emb = sinusoidal_embedding(jnp.arange(h, dtype=jnp.int32), e)      # (H, C//2)
    pos_hw = jnp.concatenate(
        [jnp.broadcast_to(xx_emb[None, :, :], (h, w, e)),
         jnp.broadcast_to(yy_emb[:, None, :], (h, w, e))], axis=-1)       # (H, W, C)

    # Hoisted 1x1 conv: batch-invariant and tiny -> plain JAX matmul, done once.
    conv_pos = jnp.dot(pos_hw.reshape(h * w, c), params["conv_w"].T,
                       precision=lax.Precision.HIGHEST) + params["conv_b"]  # (HW, C)
    conv_pos_t = conv_pos.T                                                  # (C, HW)

    # Native NCHW layout, no transposes: (B, C, H*W) is a free view.
    feats_bcp = feats_nchw.reshape(b, c, h * w)
    gamma = params["ln_gamma"].reshape(c, 1)
    beta = params["ln_beta"].reshape(c, 1)

    tile_p = _pick_tile_p(h * w, c)
    out = fused_add_layernorm(feats_bcp, conv_pos_t, gamma, beta, tile_p=tile_p)
    return out.reshape(b, c, h, w)


def init_params(key, c):
    """Deterministic synthetic parameters. Conv2d(C, C, 1) + LayerNorm(C)."""
    k1, k2 = jax.random.split(key)
    bound = 1.0 / math.sqrt(c)  # torch Conv2d default init scale
    conv_w = jax.random.uniform(k1, (c, c), jnp.float32, -bound, bound)  # (Cout, Cin)
    conv_b = jax.random.uniform(k2, (c,), jnp.float32, -bound, bound)
    return {
        "conv_w": conv_w,
        "conv_b": conv_b,
        "ln_gamma": jnp.ones((c,), jnp.float32),
        "ln_beta": jnp.zeros((c,), jnp.float32),
    }


# ------------------------------- reference -----------------------------------
def _reference(feats_nchw, params):
    b, c, h, w = feats_nchw.shape
    e = c // 2
    xx_emb = sinusoidal_embedding(jnp.arange(w), e)
    yy_emb = sinusoidal_embedding(jnp.arange(h), e)
    pos = jnp.concatenate(
        [jnp.broadcast_to(xx_emb[None, :, :], (h, w, e)),
         jnp.broadcast_to(yy_emb[:, None, :], (h, w, e))], axis=-1)     # (H, W, C)
    conv = jnp.dot(pos.reshape(-1, c), params["conv_w"].T,
                   precision=lax.Precision.HIGHEST) + params["conv_b"]
    conv = conv.reshape(h, w, c)
    x = jnp.transpose(feats_nchw, (0, 2, 3, 1)) + conv[None]
    mean = x.mean(-1, keepdims=True)
    var = ((x - mean) ** 2).mean(-1, keepdims=True)
    y = (x - mean) / jnp.sqrt(var + LN_EPS) * params["ln_gamma"] + params["ln_beta"]
    return jnp.transpose(y, (0, 3, 1, 2))


if __name__ == "__main__":
    B, C, H, W = 2, 16, 16, 16  # C >= 8, C % 4 == 0; H*W = 256 (lane-dense tiles)
    key = jax.random.PRNGKey(0)
    k_feat, k_param = jax.random.split(key)
    feats = jax.random.normal(k_feat, (B, C, H, W), jnp.float32)
    params = init_params(k_param, C)

    out = jax.jit(sinusoidal_positional_conv)(feats, params)
    out = jax.block_until_ready(out)

    ref = _reference(feats, params)
    assert out.shape == (B, C, H, W)
    assert jnp.allclose(out, ref, atol=1e-4, rtol=1e-4), "mismatch vs reference"
    print("KERNEL_OK")
</pallas_src>

<mosaic_0001>
module attributes {stable_mosaic.version = 11 : i64} {
  func.func @_add_ln_kernel(%arg0: i32, %arg1: i32, %arg2: memref<16x256xf32, #tpu.memory_space<vmem>>, %arg3: memref<1x16x256xf32, #tpu.memory_space<vmem>>, %arg4: memref<16x1xf32, #tpu.memory_space<vmem>>, %arg5: memref<16x1xf32, #tpu.memory_space<vmem>>, %arg6: memref<1x16x256xf32, #tpu.memory_space<vmem>>) attributes {dimension_semantics = [#tpu.dimension_semantics<parallel>, #tpu.dimension_semantics<parallel>], iteration_bounds = array<i64: 1, 2>, scalar_prefetch = 0 : i64, scratch_operands = 0 : i64, tpu.core_type = #tpu.core_type<tc>, window_params = [{transform_indices = @transform_0, window_bounds = array<i64: 16, 256>}, {transform_indices = @transform_1, window_bounds = array<i64: 1, 16, 256>}, {pipeline_mode = #tpu.pipeline_mode<synchronous>, transform_indices = @transform_2, window_bounds = array<i64: 16, 1>}, {pipeline_mode = #tpu.pipeline_mode<synchronous>, transform_indices = @transform_3, window_bounds = array<i64: 16, 1>}, {transform_indices = @transform_4, window_bounds = array<i64: 1, 16, 256>}]} {
    %c0 = arith.constant 0 : index
    %c0_0 = arith.constant 0 : index
    %c0_1 = arith.constant 0 : index
    %0 = vector.load %arg3[%c0, %c0_0, %c0_1] : memref<1x16x256xf32, #tpu.memory_space<vmem>>, vector<1x16x256xf32>
    %c0_2 = arith.constant 0 : index
    %c0_3 = arith.constant 0 : index
    %1 = vector.load %arg2[%c0_2, %c0_3] : memref<16x256xf32, #tpu.memory_space<vmem>>, vector<16x256xf32>
    %2 = vector.shape_cast %1 : vector<16x256xf32> to vector<1x16x256xf32>
    %3 = arith.addf %0, %2 : vector<1x16x256xf32>
    %cst = arith.constant dense<0.000000e+00> : vector<1x256xf32>
    %4 = vector.multi_reduction <add>, %3, %cst [1] : vector<1x16x256xf32> to vector<1x256xf32>
    %5 = vector.shape_cast %4 : vector<1x256xf32> to vector<1x1x256xf32>
    %cst_4 = arith.constant 1.600000e+01 : f32
    %6 = vector.broadcast %cst_4 : f32 to vector<1x1x256xf32>
    %7 = arith.divf %5, %6 : vector<1x1x256xf32>
    %8 = vector.broadcast %7 : vector<1x1x256xf32> to vector<1x16x256xf32>
    %9 = arith.subf %3, %8 : vector<1x16x256xf32>
    %10 = arith.mulf %9, %9 : vector<1x16x256xf32>
    %cst_5 = arith.constant dense<0.000000e+00> : vector<1x256xf32>
    %11 = vector.multi_reduction <add>, %10, %cst_5 [1] : vector<1x16x256xf32> to vector<1x256xf32>
    %12 = vector.shape_cast %11 : vector<1x256xf32> to vector<1x1x256xf32>
    %cst_6 = arith.constant 1.600000e+01 : f32
    %13 = vector.broadcast %cst_6 : f32 to vector<1x1x256xf32>
    %14 = arith.divf %12, %13 : vector<1x1x256xf32>
    %cst_7 = arith.constant 9.99999974E-6 : f32
    %15 = vector.broadcast %cst_7 : f32 to vector<1x1x256xf32>
    %16 = arith.addf %14, %15 : vector<1x1x256xf32>
    %17 = math.rsqrt %16 : vector<1x1x256xf32>
    %18 = vector.broadcast %17 : vector<1x1x256xf32> to vector<1x16x256xf32>
    %19 = arith.mulf %9, %18 : vector<1x16x256xf32>
    %c0_8 = arith.constant 0 : index
    %c0_9 = arith.constant 0 : index
    %20 = vector.load %arg4[%c0_8, %c0_9] : memref<16x1xf32, #tpu.memory_space<vmem>>, vector<16x1xf32>
    %21 = vector.shape_cast %20 : vector<16x1xf32> to vector<1x16x1xf32>
    %22 = vector.broadcast %21 : vector<1x16x1xf32> to vector<1x16x256xf32>
    %23 = arith.mulf %19, %22 : vector<1x16x256xf32>
    %c0_10 = arith.constant 0 : index
    %c0_11 = arith.constant 0 : index
    %24 = vector.load %arg5[%c0_10, %c0_11] : memref<16x1xf32, #tpu.memory_space<vmem>>, vector<16x1xf32>
    %25 = vector.shape_cast %24 : vector<16x1xf32> to vector<1x16x1xf32>
    %26 = vector.broadcast %25 : vector<1x16x1xf32> to vector<1x16x256xf32>
    %27 = arith.addf %23, %26 : vector<1x16x256xf32>
    %c0_12 = arith.constant 0 : index
    %c0_13 = arith.constant 0 : index
    %c0_14 = arith.constant 0 : index
    %28 = vector.load %arg6[%c0_12, %c0_13, %c0_14] : memref<1x16x256xf32, #tpu.memory_space<vmem>>, vector<1x16x256xf32>
    tpu.vector_store %arg6[%c0_12, %c0_13, %c0_14], %27 {strides = array<i32>} : memref<1x16x256xf32, #tpu.memory_space<vmem>>, vector<1x16x256xf32>,
    return
  }
  func.func @transform_0(%arg0: i32, %arg1: i32) -> (i32, i32) {
    %c0_i32 = arith.constant 0 : i32
    %c0_i32_0 = arith.constant 0 : i32
    return %c0_i32, %arg0 : i32, i32
  }
  func.func @transform_1(%arg0: i32, %arg1: i32) -> (i32, i32, i32) {
    %c0_i32 = arith.constant 0 : i32
    %c0_i32_0 = arith.constant 0 : i32
    return %arg1, %c0_i32, %arg0 : i32, i32, i32
  }
  func.func @transform_2(%arg0: i32, %arg1: i32) -> (i32, i32) {
    %c0_i32 = arith.constant 0 : i32
    %c0_i32_0 = arith.constant 0 : i32
    %c0_i32_1 = arith.constant 0 : i32
    return %c0_i32, %c0_i32_0 : i32, i32
  }
  func.func @transform_3(%arg0: i32, %arg1: i32) -> (i32, i32) {
    %c0_i32 = arith.constant 0 : i32
    %c0_i32_0 = arith.constant 0 : i32
    %c0_i32_1 = arith.constant 0 : i32
    return %c0_i32, %c0_i32_0 : i32, i32
  }
  func.func @transform_4(%arg0: i32, %arg1: i32) -> (i32, i32, i32) {
    %c0_i32 = arith.constant 0 : i32
    %c0_i32_0 = arith.constant 0 : i32
    return %arg1, %c0_i32, %arg0 : i32, i32, i32
  }
}

</mosaic_0001>

<llo_original>
// kernel: sinusoidal_positional_conv.1
$region0: #{sinusoidal_positional_conv.1}
  #allocation0 [shape = 'u32[]', space=smem, size = 0x4, offset = 0x4, fixed_abs, tag = 'smem constant byte address 0x4 - core index']
  #allocation1 [shape = 'u32[72,128]{1,0:T(1,128)}', space=vmem, size = 0x9000, scoped, tag = 'internal scratch']
  %s0 = inlined_call_operand.vmem [shape: f32[16,256], index: 0, kind: input, shape index: {}]
  %s1 = inlined_call_operand.vmem [shape: f32[2,16,256], index: 1, kind: input, shape index: {}]
  %s2 = inlined_call_operand.vmem [shape: f32[16,1], index: 2, kind: input, shape index: {}]
  %s3 = inlined_call_operand.vmem [shape: f32[16,1], index: 3, kind: input, shape index: {}]
  %s4 = inlined_call_operand.vmem [shape: f32[2,16,256], index: 4, kind: output, shape index: {}]
  %s5 = sld [smem:[#allocation0]]
  $region49: #{sinusoidal_positional_conv.1} parent=0
    _
  %s7 = ssub.s32 1, %s5
  %s8 = scalar_select 0, %s7, %s5
  loop: start=0, step=1, limit=4
  $region2: #{sinusoidal_positional_conv.1} parent=0 // loop_pre_header
    _
  $region3: #{sinusoidal_positional_conv.1} parent=0 // loop_header
    %s10 = sphi 0, %s14
    %p11 = scmp.ge.s32.totalorder %s10, 4
    %s17 = sphi 0, %s29
    %s18 = sphi 0, %s25
    %s19 = sphi 0, %s17
    %s20 = sphi 0, %s18
    %s21 = sphi 0, %s19
    %s22 = sphi 0, %s20
    %s32 = sphi 0, %s34
    %s35 = sphi 0, %s32
    %s36 = sphi 0, %s35
    %s52 = sphi 0, %s36
    %s60 = sphi 0, %s62
    %s63 = sphi 0, %s60
    %s64 = sphi 0, %s63
    %s80 = sphi 0, %s64
    %s84 = sphi 0, %s84
    %s86 = sphi 0, %s84
    %s87 = sphi 0, %s86
    %s101 = sphi 0, %s87
    %s105 = sphi 0, %s105
    %s107 = sphi 0, %s105
    %s108 = sphi 0, %s107
    %s122 = sphi 0, %s108
    %s130 = sphi 0, %s132
    %s133 = sphi 0, %s130
    %s134 = sphi 0, %s133
    %s150 = sphi 0, %s134
  $region4: #{sinusoidal_positional_conv.1} parent=0 // loop_header_branch
    %13 = sbr.rel (%p11) target = $region8
  $region5: #{sinusoidal_positional_conv.1} parent=0 // loop_body
    %s15 = ssub.s32 %s10, 1
    %s16 = ssub.s32 %s10, 2
    %s23 = sadd.s32 1, %s18
    %p24 = scmp.ge.s32.totalorder %s23, 2
    %s25 = scalar_select %p24, 0, %s23
    %s26 = sadd.s32 1, %s17
    %s27 = scalar_select %p24, %s26, %s17
    %p28 = scmp.ge.s32.totalorder %s27, 1
    %s29 = scalar_select %p28, 0, %s27
    %s30 = ssub.s32 %s17, %s29
    %p31 = scmp.eq.s32.totalorder %s30, 0
    %s33 = sadd.s32 %s32, 1
    %s34 = scalar_select %p31, %s32, %s33
    %p37 = pneg %p31
    %p38 = scmp.eq.s32.totalorder %s10, 1
    %p39 = por %p37, %p38
    %p40 = scmp.ne.s32.totalorder %s32, %s35
    %p41 = scmp.eq.s32.totalorder %s10, 0
    %p42 = por %p40, %p41
    %p43 = scmp.ne.s32.totalorder %s32, %s35
    %p44 = scmp.eq.s32.totalorder %s15, 1
    %p45 = por %p43, %p44
    %p46 = scmp.ne.s32.totalorder %s35, %s36
    %p47 = scmp.eq.s32.totalorder %s15, 0
    %p48 = por %p46, %p47
    %p49 = scmp.ne.s32.totalorder %s35, %s36
    %p50 = scmp.eq.s32.totalorder %s16, 1
    %p51 = por %p49, %p50
    %p53 = scmp.ne.s32.totalorder %s36, %s52
    %p54 = scmp.eq.s32.totalorder %s16, 0
    %p55 = por %p53, %p54
    %s56 = ssub.s32 %s18, %s25
    %s57 = ssub.s32 %s17, %s29
    %s58 = sor.u32 %s56, %s57
    %p59 = scmp.eq.s32.totalorder %s58, 0
    %s61 = sadd.s32 %s60, 1
    %s62 = scalar_select %p59, %s60, %s61
    %p65 = pneg %p59
    %p66 = scmp.eq.s32.totalorder %s10, 1
    %p67 = por %p65, %p66
    %p68 = scmp.ne.s32.totalorder %s60, %s63
    %p69 = scmp.eq.s32.totalorder %s10, 0
    %p70 = por %p68, %p69
    %p71 = scmp.ne.s32.totalorder %s60, %s63
    %p72 = scmp.eq.s32.totalorder %s15, 1
    %p73 = por %p71, %p72
    %p74 = scmp.ne.s32.totalorder %s63, %s64
    %p75 = scmp.eq.s32.totalorder %s15, 0
    %p76 = por %p74, %p75
    %p77 = scmp.ne.s32.totalorder %s63, %s64
    %p78 = scmp.eq.s32.totalorder %s16, 1
    %p79 = por %p77, %p78
    %p81 = scmp.ne.s32.totalorder %s64, %s80
    %p82 = scmp.eq.s32.totalorder %s16, 0
    %p83 = por %p81, %p82
    %s85 = sadd.s32 %s84, 1
    %p88 = scmp.eq.s32.totalorder %s10, 1
    %p89 = scmp.ne.s32.totalorder %s84, %s86
    %p90 = scmp.eq.s32.totalorder %s10, 0
    %p91 = por %p89, %p90
    %p92 = scmp.ne.s32.totalorder %s84, %s86
    %p93 = scmp.eq.s32.totalorder %s15, 1
    %p94 = por %p92, %p93
    %p95 = scmp.ne.s32.totalorder %s86, %s87
    %p96 = scmp.eq.s32.totalorder %s15, 0
    %p97 = por %p95, %p96
    %p98 = scmp.ne.s32.totalorder %s86, %s87
    %p99 = scmp.eq.s32.totalorder %s16, 1
    %p100 = por %p98, %p99
    %p102 = scmp.ne.s32.totalorder %s87, %s101
    %p103 = scmp.eq.s32.totalorder %s16, 0
    %p104 = por %p102, %p103
    %s106 = sadd.s32 %s105, 1
    %p109 = scmp.eq.s32.totalorder %s10, 1
    %p110 = scmp.ne.s32.totalorder %s105, %s107
    %p111 = scmp.eq.s32.totalorder %s10, 0
    %p112 = por %p110, %p111
    %p113 = scmp.ne.s32.totalorder %s105, %s107
    %p114 = scmp.eq.s32.totalorder %s15, 1
    %p115 = por %p113, %p114
    %p116 = scmp.ne.s32.totalorder %s107, %s108
    %p117 = scmp.eq.s32.totalorder %s15, 0
    %p118 = por %p116, %p117
    %p119 = scmp.ne.s32.totalorder %s107, %s108
    %p120 = scmp.eq.s32.totalorder %s16, 1
    %p121 = por %p119, %p120
    %p123 = scmp.ne.s32.totalorder %s108, %s122
    %p124 = scmp.eq.s32.totalorder %s16, 0
    %p125 = por %p123, %p124
    %s126 = ssub.s32 %s18, %s25
    %s127 = ssub.s32 %s17, %s29
    %s128 = sor.u32 %s126, %s127
    %p129 = scmp.eq.s32.totalorder %s128, 0
    %s131 = sadd.s32 %s130, 1
    %s132 = scalar_select %p129, %s130, %s131
    %p135 = pneg %p129
    %p136 = scmp.eq.s32.totalorder %s10, 1
    %p137 = por %p135, %p136
    %p138 = scmp.ne.s32.totalorder %s130, %s133
    %p139 = scmp.eq.s32.totalorder %s10, 0
    %p140 = por %p138, %p139
    %p141 = scmp.ne.s32.totalorder %s130, %s133
    %p142 = scmp.eq.s32.totalorder %s15, 1
    %p143 = por %p141, %p142
    %p144 = scmp.ne.s32.totalorder %s133, %s134
    %p145 = scmp.eq.s32.totalorder %s15, 0
    %p146 = por %p144, %p145
    %p147 = scmp.ne.s32.totalorder %s133, %s134
    %p148 = scmp.eq.s32.totalorder %s16, 1
    %p149 = por %p147, %p148
    %p151 = scmp.ne.s32.totalorder %s134, %s150
    %p152 = scmp.eq.s32.totalorder %s16, 0
    %p153 = por %p151, %p152
    %p154 = scmp.le.s32.totalorder 1, %s10
    %p155 = scmp.lt.s32.totalorder %s10, 3
    %p156 = pnand %p154, %p155
    %p157 = pneg %p156
    // Predicated region
    $region9: #{sinusoidal_positional_conv.1} parent=5 // pred_check
      _
    $region10: #{sinusoidal_positional_conv.1} parent=5 // pred_check_branch
      %159 = sbr.rel (%p156) target = $region12
    $region11: #{sinusoidal_positional_conv.1} parent=5 // pred_region
      %s160 = ssub.s32 %s10, 1
      // Predicated region
      $region13: #{sinusoidal_positional_conv.1} parent=11 // pred_check
        %p161 = pneg %p48
      $region14: #{sinusoidal_positional_conv.1} parent=11 // pred_check_branch
        %163 = sbr.rel (%p161) target = $region16
      $region15: #{sinusoidal_positional_conv.1} parent=11 // pred_region
        %s164 = smul.u32 2, %s19
        %p165 = scmp.lt.s32.totalorder %s164, 1
        %s166 = scalar_select %p165, %s164, 1
        %s167 = smul.addr %s166, 8
        %s168 = scalar_lea.vmem %s0, %s167
        %s169 = smul.u32 2, %s19
      $region16: #{sinusoidal_positional_conv.1} parent=11 // pred_fallthru
        _
      // Predicated region
      $region17: #{sinusoidal_positional_conv.1} parent=11 // pred_check
        %p170 = pneg %p97
      $region18: #{sinusoidal_positional_conv.1} parent=11 // pred_check_branch
        %172 = sbr.rel (%p170) target = $region20
      $region19: #{sinusoidal_positional_conv.1} parent=11 // pred_region
        _
      $region20: #{sinusoidal_positional_conv.1} parent=11 // pred_fallthru
        _
      // Predicated region
      $region21: #{sinusoidal_positional_conv.1} parent=11 // pred_check
        %p173 = pneg %p118
      $region22: #{sinusoidal_positional_conv.1} parent=11 // pred_check_branch
        %175 = sbr.rel (%p173) target = $region24
      $region23: #{sinusoidal_positional_conv.1} parent=11 // pred_region
        _
      $region24: #{sinusoidal_positional_conv.1} parent=11 // pred_fallthru
        _
    $region12: #{sinusoidal_positional_conv.1} parent=5 // pred_fallthru
      _
    %p176 = scmp.lt.s32.totalorder %s10, 2
    // Predicated region
    $region25: #{sinusoidal_positional_conv.1} parent=5 // pred_check
      %p177 = pneg %p176
    $region26: #{sinusoidal_positional_conv.1} parent=5 // pred_check_branch
      %179 = sbr.rel (%p177) target = $region28
    $region27: #{sinusoidal_positional_conv.1} parent=5 // pred_region
      // Predicated region
      $region29: #{sinusoidal_positional_conv.1} parent=27 // pred_check
        %p180 = pneg %p70
      $region30: #{sinusoidal_positional_conv.1} parent=27 // pred_check_branch
        %182 = sbr.rel (%p180) target = $region32
      $region31: #{sinusoidal_positional_conv.1} parent=27 // pred_region
        %s183 = smul.u32 2, %s17
        %p184 = scmp.lt.s32.totalorder %s18, 1
        %s185 = scalar_select %p184, %s18, 1
        %p186 = scmp.lt.s32.totalorder %s183, 1
        %s187 = scalar_select %p186, %s183, 1
        %s188 = smul.addr %s185, 4
        %s189 = sadd.s32 %s187, %s188
        %s190 = smul.addr %s189, 8
        %s191 = scalar_lea.vmem %s1, %s190
        %s192 = smul.u32 2, %s17
      $region32: #{sinusoidal_positional_conv.1} parent=27 // pred_fallthru
        _
    $region28: #{sinusoidal_positional_conv.1} parent=5 // pred_fallthru
      _
    %p193 = scmp.le.s32.totalorder 1, %s10
    %p194 = scmp.lt.s32.totalorder %s10, 3
    %p195 = pnand %p193, %p194
    %p196 = pneg %p195
    // Predicated region
    $region33: #{sinusoidal_positional_conv.1} parent=5 // pred_check
      _
    $region34: #{sinusoidal_positional_conv.1} parent=5 // pred_check_branch
      %198 = sbr.rel (%p195) target = $region36
    $region35: #{sinusoidal_positional_conv.1} parent=5 // pred_region
      %s199 = ssub.s32 %s10, 1
      %s200 = smul.u32 2, %s19
      %p201 = scmp.lt.s32.totalorder %s200, 1
      %s202 = scalar_select %p201, %s200, 1
      %s203 = smul.addr %s202, 8
      %s204 = scalar_lea.vmem %s0, %s203
      %p205 = pneg %p48
      %p206 = pneg %p45
      %s207 = smul.u32 2, %s19
      %p208 = scmp.lt.s32.totalorder %s20, 1
      %s209 = scalar_select %p208, %s20, 1
      %p210 = scmp.lt.s32.totalorder %s207, 1
      %s211 = scalar_select %p210, %s207, 1
      %s212 = smul.addr %s209, 4
      %s213 = sadd.s32 %s211, %s212
      %s214 = smul.addr %s213, 8
      %s215 = scalar_lea.vmem %s1, %s214
      %p216 = pneg %p76
      %p217 = pneg %p73
      %p218 = pneg %p97
      %p219 = pneg %p94
      %p220 = pneg %p118
      %p221 = pneg %p115
      %p222 = pneg %p146
      %p223 = pneg %p143
      %s224 = smul.u32 2, %s19
      %p225 = scmp.lt.s32.totalorder %s20, 1
      %s226 = scalar_select %p225, %s20, 1
      %p227 = scmp.lt.s32.totalorder %s224, 1
      %s228 = scalar_select %p227, %s224, 1
      %s229 = smul.addr %s226, 4
      %s230 = sadd.s32 %s228, %s229
      %s231 = smul.addr %s230, 8
      %s232 = scalar_lea.vmem %s4, %s231
      %s233 = smul.u32 2, %s19
      %p234 = scmp.lt.s32.totalorder %s233, 1
      %s235 = scalar_select %p234, %s233, 1
      %s236 = smul.addr %s235, 8
      %s237 = scalar_lea.vmem %s0, %s236
      %s238 = smul.u32 2, %s19
      %s239 = smul.u32 2, %s19
      %p240 = scmp.lt.s32.totalorder %s20, 1
      %s241 = scalar_select %p240, %s20, 1
      %p242 = scmp.lt.s32.totalorder %s239, 1
      %s243 = scalar_select %p242, %s239, 1
      %s244 = smul.addr %s241, 4
      %s245 = sadd.s32 %s243, %s244
      %s246 = smul.addr %s245, 8
      %s247 = scalar_lea.vmem %s1, %s246
      %s248 = smul.u32 2, %s19
      %s249 = smul.u32 2, %s19
      %p250 = scmp.lt.s32.totalorder %s20, 1
      %s251 = scalar_select %p250, %s20, 1
      %p252 = scmp.lt.s32.totalorder %s249, 1
      %s253 = scalar_select %p252, %s249, 1
      %s254 = smul.addr %s251, 4
      %s255 = sadd.s32 %s253, %s254
      %s256 = smul.addr %s255, 8
      %s257 = scalar_lea.vmem %s4, %s256
      %s258 = smul.u32 2, %s19
      %v259 = vld [vmem:[%s247] sm:$0xff]
      %v260 = vld [vmem:[%s247 + $0x8] sm:$0xff]
      %v261 = vld [vmem:[%s247 + $0x10] sm:$0xff]
      %v262 = vld [vmem:[%s247 + $0x18] sm:$0xff]
      %v263 = vld [vmem:[%s237] sm:$0xff]
      %v264 = vld [vmem:[%s237 + $0x8] sm:$0xff]
      %v265 = vld [vmem:[%s237 + $0x10] sm:$0xff]
      %v266 = vld [vmem:[%s237 + $0x18] sm:$0xff]
      %v267 = vadd.f32 %v259, %v263
      %v268 = vadd.f32 %v260, %v264
      %v269 = vadd.f32 %v261, %v265
      %v270 = vadd.f32 %v262, %v266
      %v271 = vadd.f32 %v267, %v269
      %v272 = vrot.slane %v271, 4
      %v273 = vadd.f32 %v271, %v272
      %v274 = vrot.slane %v273, 2
      %v275 = vadd.f32 %v273, %v274
      %v276 = vrot.slane %v275, 1
      %v277 = vadd.f32 %v275, %v276
      %v278 = vadd.f32 %v268, %v270
      %v279 = vrot.slane %v278, 4
      %v280 = vadd.f32 %v278, %v279
      %v281 = vrot.slane %v280, 2
      %v282 = vadd.f32 %v280, %v281
      %v283 = vrot.slane %v282, 1
      %v284 = vadd.f32 %v282, %v283
      %v285 = vrcp.pop 16.0
      %v286 = vmul.f32 16.0, %v285
      %v287 = vsub.f32 1.0, %v286
      %v288 = vmul.f32 %v285, %v287
      %v289 = vadd.f32 %v285, %v288
      %vm290 = vweird.f32 %v285
      %v291 = vsel %vm290, %v285, %v289
      %v292 = vmul.f32 %v277, %v291
      %v293 = vmul.f32 %v284, %v291
      %v294 = vsub.f32 %v267, %v292
      %v295 = vsub.f32 %v268, %v293
      %v296 = vsub.f32 %v269, %v292
      %v297 = vsub.f32 %v270, %v293
      %v298 = vmul.f32 %v294, %v294
      %v299 = vmul.f32 %v295, %v295
      %v300 = vmul.f32 %v296, %v296
      %v301 = vmul.f32 %v297, %v297
      %v302 = vadd.f32 %v298, %v300
      %v303 = vrot.slane %v302, 4
      %v304 = vadd.f32 %v302, %v303
      %v305 = vrot.slane %v304, 2
      %v306 = vadd.f32 %v304, %v305
      %v307 = vrot.slane %v306, 1
      %v308 = vadd.f32 %v306, %v307
      %v309 = vadd.f32 %v299, %v301
      %v310 = vrot.slane %v309, 4
      %v311 = vadd.f32 %v309, %v310
      %v312 = vrot.slane %v311, 2
      %v313 = vadd.f32 %v311, %v312
      %v314 = vrot.slane %v313, 1
      %v315 = vadd.f32 %v313, %v314
      %v316 = vmul.f32 %v308, %v291
      %v317 = vmul.f32 %v315, %v291
      %v318 = vadd.f32 %v316, 1e-05
      %v319 = vadd.f32 %v317, 1e-05
      %v320 = vrsqrt.pop %v318
      %v321 = vmul.f32 %v320, %v318
      %v322 = vmul.f32 %v321, %v320
      %v323 = vmul.f32 0.5, %v322
      %v324 = vsub.f32 1.5, %v323
      %v325 = vmul.f32 %v320, %v324
      %vm326 = vweird.f32 %v318
      %vm327 = vweird.f32 %v320
      %vm328 = vmor %vm326, %vm327
      %v329 = vsel %vm328, %v320, %v325
      %v330 = vrsqrt.pop %v319
      %v331 = vmul.f32 %v330, %v319
      %v332 = vmul.f32 %v331, %v330
      %v333 = vmul.f32 0.5, %v332
      %v334 = vsub.f32 1.5, %v333
      %v335 = vmul.f32 %v330, %v334
      %vm336 = vweird.f32 %v319
      %vm337 = vweird.f32 %v330
      %vm338 = vmor %vm336, %vm337
      %v339 = vsel %vm338, %v330, %v335
      %v340 = vmul.f32 %v294, %v329
      %v341 = vmul.f32 %v295, %v339
      %v342 = vmul.f32 %v296, %v329
      %v343 = vmul.f32 %v297, %v339
      %v344 = vld [vmem:[%s2] sm:$0xff]
      %v345 = vld [vmem:[%s2 + $0x8] sm:$0xff]
      %347 = vset.pattern.permute.xlu0 0
      %348 = vperm.xlu0 %347, %v344
      %v349 = vpop.permute.xlu0 %348
      %352 = vset.pattern.permute.xlu0 0
      %353 = vperm.xlu0 %352, %v345
      %v354 = vpop.permute.xlu0 %353
      %v356 = vmul.f32 %v340, %v349
      %v357 = vmul.f32 %v341, %v349
      %v358 = vmul.f32 %v342, %v354
      %v359 = vmul.f32 %v343, %v354
      %v360 = vld [vmem:[%s3] sm:$0xff]
      %v361 = vld [vmem:[%s3 + $0x8] sm:$0xff]
      %363 = vset.pattern.permute.xlu0 0
      %364 = vperm.xlu0 %363, %v360
      %v365 = vpop.permute.xlu0 %364
      %368 = vset.pattern.permute.xlu0 0
      %369 = vperm.xlu0 %368, %v361
      %v370 = vpop.permute.xlu0 %369
      %v372 = vadd.f32 %v356, %v365
      %v373 = vadd.f32 %v357, %v365
      %v374 = vadd.f32 %v358, %v370
      %v375 = vadd.f32 %v359, %v370
      %376 = vst [vmem:[%s257] sm:$0xff] %v372
      %377 = vst [vmem:[%s257 + $0x8] sm:$0xff] %v373
      %378 = vst [vmem:[%s257 + $0x10] sm:$0xff] %v374
      %379 = vst [vmem:[%s257 + $0x18] sm:$0xff] %v375
      %s380 = smul.u32 2, %s19
      %p381 = scmp.lt.s32.totalorder %s20, 1
      %s382 = scalar_select %p381, %s20, 1
      %p383 = scmp.lt.s32.totalorder %s380, 1
      %s384 = scalar_select %p383, %s380, 1
      %s385 = smul.addr %s382, 4
      %s386 = sadd.s32 %s384, %s385
      %s387 = smul.addr %s386, 8
      %s388 = scalar_lea.vmem %s4, %s387
      // Predicated region
      $region37: #{sinusoidal_positional_conv.1} parent=35 // pred_check
        %p389 = pneg %p143
      $region38: #{sinusoidal_positional_conv.1} parent=35 // pred_check_branch
        %391 = sbr.rel (%p389) target = $region40
      $region39: #{sinusoidal_positional_conv.1} parent=35 // pred_region
        %s392 = smul.u32 2, %s19
      $region40: #{sinusoidal_positional_conv.1} parent=35 // pred_fallthru
        _
    $region36: #{sinusoidal_positional_conv.1} parent=5 // pred_fallthru
      _
    %p393 = scmp.le.s32.totalorder 2, %s10
    // Predicated region
    $region41: #{sinusoidal_positional_conv.1} parent=5 // pred_check
      %p394 = pneg %p393
    $region42: #{sinusoidal_positional_conv.1} parent=5 // pred_check_branch
      %396 = sbr.rel (%p394) target = $region44
    $region43: #{sinusoidal_positional_conv.1} parent=5 // pred_region
      %s397 = ssub.s32 %s10, 2
      // Predicated region
      $region45: #{sinusoidal_positional_conv.1} parent=43 // pred_check
        %p398 = pneg %p149
      $region46: #{sinusoidal_positional_conv.1} parent=43 // pred_check_branch
        %400 = sbr.rel (%p398) target = $region48
      $region47: #{sinusoidal_positional_conv.1} parent=43 // pred_region
        %s401 = smul.u32 2, %s21
        %p402 = scmp.lt.s32.totalorder %s22, 1
        %s403 = scalar_select %p402, %s22, 1
        %p404 = scmp.lt.s32.totalorder %s401, 1
        %s405 = scalar_select %p404, %s401, 1
        %s406 = smul.addr %s403, 4
        %s407 = sadd.s32 %s405, %s406
        %s408 = smul.addr %s407, 8
        %s409 = scalar_lea.vmem %s4, %s408
      $region48: #{sinusoidal_positional_conv.1} parent=43 // pred_fallthru
        _
    $region44: #{sinusoidal_positional_conv.1} parent=5 // pred_fallthru
      _
  $region6: #{sinusoidal_positional_conv.1} parent=0 // loop_footer
    %s14 = sadd.s32 1, %s10
  $region7: #{sinusoidal_positional_conv.1} parent=0 // loop_footer_branch
    %9 = sbr.rel target = $region3
  $region8: #{sinusoidal_positional_conv.1} parent=0 // loop_exit
    _

</llo_original>
